<compile_context>
chip_gen: v6e
topology: v6e:2x2x1
jax: 0.10.0
libtpu: 0.0.40
codegen_flags: <defaults>
</compile_context>

<pallas_src>
import math
from functools import partial

import jax
import jax.numpy as jnp
from jax.experimental import pallas as pl
from jax.experimental.pallas import tpu as pltpu


# ------------------------------------------------------------------ #
# Small helpers (run inside kernels, f32)                              #
# ------------------------------------------------------------------ #
def _layernorm(x, g, b, eps=1e-6):
    # single-pass statistics: var = E[x^2] - mu^2
    mu = jnp.mean(x, axis=-1, keepdims=True)
    ms = jnp.mean(x * x, axis=-1, keepdims=True)
    var = ms - mu * mu
    return (x - mu) * jax.lax.rsqrt(var + eps) * g + b


def _gelu_exact(x):
    # matches torch.nn.GELU() default (erf form)
    return 0.5 * x * (1.0 + jax.lax.erf(x * (1.0 / math.sqrt(2.0))))


# ------------------------------------------------------------------ #
# Pallas kernels                                                       #
# ------------------------------------------------------------------ #
def _patch_embed_kernel(a_ref, w_ref, b_ref, o_ref):
    # a: (tile_m, C*P*P) bf16, w: (C*P*P, D) bf16, b: (1, D) f32 -> o: (tile_m, D) f32
    o_ref[...] = (
        jnp.dot(a_ref[...], w_ref[...], preferred_element_type=jnp.float32)
        + b_ref[...]
    )


def _vit_block_kernel(*refs, num_heads, n_valid, fuse_final_norm):
    # One batch element per grid step. x block: (1, N, D) f32; weights bf16; biases f32.
    if fuse_final_norm:
        (x_ref, ln1g_ref, ln1b_ref, wqkv_ref, bqkv_ref, wo_ref, bo_ref,
         ln2g_ref, ln2b_ref, w1_ref, b1_ref, w2_ref, b2_ref,
         fng_ref, fnb_ref, o_ref, onorm_ref, attn_ref) = refs
    else:
        (x_ref, ln1g_ref, ln1b_ref, wqkv_ref, bqkv_ref, wo_ref, bo_ref,
         ln2g_ref, ln2b_ref, w1_ref, b1_ref, w2_ref, b2_ref,
         o_ref, attn_ref) = refs
        fng_ref = fnb_ref = onorm_ref = None

    x = x_ref[0]                           # (N, D) f32
    N, D = x.shape
    DH = D // num_heads
    scale = 1.0 / math.sqrt(DH)

    # --- attention (pre-norm) ---
    h = _layernorm(x, ln1g_ref[...], ln1b_ref[...])                       # f32
    qkv = (
        jnp.dot(h.astype(jnp.bfloat16), wqkv_ref[...],
                preferred_element_type=jnp.float32)
        + bqkv_ref[...]
    )                                                                      # (N, 3D) f32

    # key-side mask for padded tokens (built once, broadcast over rows)
    if n_valid < N:
        col = jax.lax.broadcasted_iota(jnp.int32, (1, N), 1)
        key_bias = jnp.where(col < n_valid, 0.0, -1e30).astype(jnp.float32)
    else:
        key_bias = None

    # per-head attention; head outputs stored into VMEM scratch (no concat, no k.T)
    for hh in range(num_heads):                       # static unrolled loop
        q = qkv[:, hh * DH:(hh + 1) * DH] * scale
        k = qkv[:, D + hh * DH: D + (hh + 1) * DH]
        v = qkv[:, 2 * D + hh * DH: 2 * D + (hh + 1) * DH]
        # q @ k^T without materializing the transpose: contract the DH axis of both.
        s = jax.lax.dot_general(
            q.astype(jnp.bfloat16), k.astype(jnp.bfloat16),
            (((1,), (1,)), ((), ())),
            preferred_element_type=jnp.float32)        # (N, N) f32
        if key_bias is not None:
            s = s + key_bias
        s = s - jnp.max(s, axis=-1, keepdims=True)
        p = jnp.exp(s)
        denom = jnp.sum(p, axis=-1, keepdims=True)
        p = p * pl.reciprocal(denom, approx=True)      # EUP reciprocal, frees the VPU
        attn_ref[:, hh * DH:(hh + 1) * DH] = jnp.dot(
            p.astype(jnp.bfloat16), v.astype(jnp.bfloat16),
            preferred_element_type=jnp.float32)

    attn = attn_ref[...]                               # (N, D) f32
    x = x + (jnp.dot(attn.astype(jnp.bfloat16), wo_ref[...],
                     preferred_element_type=jnp.float32) + bo_ref[...])

    # --- MLP (pre-norm) ---
    # TODO(synk): for ViT-L-scale hidden dims on v7x, tile w1/w2 over the hidden dim
    #             with an extra grid axis so the weights are not fully VMEM-resident.
    h2 = _layernorm(x, ln2g_ref[...], ln2b_ref[...])
    m = (jnp.dot(h2.astype(jnp.bfloat16), w1_ref[...],
                 preferred_element_type=jnp.float32) + b1_ref[...])
    m = _gelu_exact(m)
    x = x + (jnp.dot(m.astype(jnp.bfloat16), w2_ref[...],
                     preferred_element_type=jnp.float32) + b2_ref[...])

    o_ref[0] = x
    if fuse_final_norm:
        # fused final LayerNorm epilogue for collected intermediate layers
        onorm_ref[0] = _layernorm(x, fng_ref[...], fnb_ref[...])


# ------------------------------------------------------------------ #
# Wrappers calling pallas_call                                         #
# ------------------------------------------------------------------ #
def patch_embed(patches_flat_bf16, w_bf16, b_f32):
    # patches: (M, C*P*P) bf16, w: (C*P*P, D) bf16, b: (1, D) f32 -> (M, D) f32
    M, K = patches_flat_bf16.shape
    D = w_bf16.shape[1]
    tile_m = M if M <= 256 else 256
    return pl.pallas_call(
        _patch_embed_kernel,
        out_shape=jax.ShapeDtypeStruct((M, D), jnp.float32),
        grid=(pl.cdiv(M, tile_m),),
        in_specs=[
            pl.BlockSpec((tile_m, K), lambda i: (i, 0)),
            pl.BlockSpec((K, D), lambda i: (0, 0)),
            pl.BlockSpec((1, D), lambda i: (0, 0)),
        ],
        out_specs=pl.BlockSpec((tile_m, D), lambda i: (i, 0)),
        compiler_params=pltpu.CompilerParams(dimension_semantics=("parallel",)),
    )(patches_flat_bf16, w_bf16, b_f32)


def _block_vmem_bytes(N, D, Dm, fused):
    bf16, f32 = 2, 4
    weights = (D * 3 * D + D * D + D * Dm + Dm * D) * bf16
    small = (3 * D + 6 * D + Dm + (2 * D if fused else 0)) * f32
    acts = (N * D) * f32 * (2 + 2 + (2 if fused else 0) + 1)   # in/out dbl-buf + scratch
    temps = (N * 3 * D + N * Dm + N * N + 2 * N * D) * f32
    est = 2 * (weights + small + acts + temps)
    # floor above every chip's default scoped limit we rely on, cap well inside v7x's 64 MiB
    return int(min(max(est, 32 * 1024 * 1024), 48 * 1024 * 1024))


def run_vit_block(x, params, num_heads, n_valid, final_norm=None):
    # x: (B, N, D) f32; weights in `params` are bf16, biases/LN params f32.
    B, N, D = x.shape
    Dm = params["w1"].shape[1]
    fuse = final_norm is not None

    const2d = lambda r, c: pl.BlockSpec((r, c), lambda b: (0, 0))
    tok_spec = pl.BlockSpec((1, N, D), lambda b: (b, 0, 0))

    in_specs = [
        tok_spec,
        const2d(1, D), const2d(1, D),            # ln1 gamma, beta
        const2d(D, 3 * D), const2d(1, 3 * D),    # wqkv, bqkv
        const2d(D, D), const2d(1, D),            # wo, bo
        const2d(1, D), const2d(1, D),            # ln2 gamma, beta
        const2d(D, Dm), const2d(1, Dm),          # w1, b1
        const2d(Dm, D), const2d(1, D),           # w2, b2
    ]
    inputs = [
        x,
        params["ln1_g"], params["ln1_b"],
        params["wqkv"], params["bqkv"],
        params["wo"], params["bo"],
        params["ln2_g"], params["ln2_b"],
        params["w1"], params["b1"],
        params["w2"], params["b2"],
    ]
    out_shapes = [jax.ShapeDtypeStruct((B, N, D), jnp.float32)]
    out_specs = [tok_spec]
    if fuse:
        fg, fb = final_norm
        in_specs += [const2d(1, D), const2d(1, D)]
        inputs += [fg, fb]
        out_shapes.append(jax.ShapeDtypeStruct((B, N, D), jnp.float32))
        out_specs.append(tok_spec)

    # TODO(synk): for v7x with tiny batches, add a second parallel grid axis over
    #             query-row tiles so both TensorCores get work when B is small/odd.
    return pl.pallas_call(
        partial(_vit_block_kernel, num_heads=num_heads, n_valid=n_valid,
                fuse_final_norm=fuse),
        out_shape=tuple(out_shapes) if fuse else out_shapes[0],
        grid=(B,),
        in_specs=in_specs,
        out_specs=tuple(out_specs) if fuse else out_specs[0],
        scratch_shapes=[pltpu.VMEM((N, D), jnp.float32)],   # per-head attention slab
        compiler_params=pltpu.CompilerParams(
            dimension_semantics=("parallel",),
            vmem_limit_bytes=_block_vmem_bytes(N, D, Dm, fuse),
        ),
    )(*inputs)


# ------------------------------------------------------------------ #
# Deterministic parameter construction (synthetic "feature_model")     #
# ------------------------------------------------------------------ #
def make_params(key, *, img_size, patch_size, in_chans, embed_dim, depth, mlp_ratio):
    n_patches = (img_size // patch_size) ** 2
    hidden = embed_dim * mlp_ratio
    keys = iter(jax.random.split(key, 4 + depth * 8))
    # weights stored bf16 in HBM (MXU-native); biases / LN params stay f32
    w_bf16 = lambda k, shape, s: (s * jax.random.normal(k, shape)).astype(jnp.bfloat16)
    f32 = lambda k, shape, s: (s * jax.random.normal(k, shape)).astype(jnp.float32)

    params = {
        "patch_w": w_bf16(next(keys), (in_chans * patch_size * patch_size, embed_dim), 0.02),
        "patch_b": jnp.zeros((1, embed_dim), jnp.float32),
        "cls_token": f32(next(keys), (1, 1, embed_dim), 0.02),
        "pos_embed": f32(next(keys), (1, n_patches + 1, embed_dim), 0.02),
        "final_g": jnp.ones((1, embed_dim), jnp.float32),
        "final_b": jnp.zeros((1, embed_dim), jnp.float32),
        "blocks": [],
    }
    for _ in range(depth):
        blk = {
            "ln1_g": jnp.ones((1, embed_dim), jnp.float32),
            "ln1_b": jnp.zeros((1, embed_dim), jnp.float32),
            "wqkv": w_bf16(next(keys), (embed_dim, 3 * embed_dim), 0.02),
            "bqkv": jnp.zeros((1, 3 * embed_dim), jnp.float32),
            "wo": w_bf16(next(keys), (embed_dim, embed_dim), 0.02),
            "bo": jnp.zeros((1, embed_dim), jnp.float32),
            "ln2_g": jnp.ones((1, embed_dim), jnp.float32),
            "ln2_b": jnp.zeros((1, embed_dim), jnp.float32),
            "w1": w_bf16(next(keys), (embed_dim, hidden), 0.02),
            "b1": jnp.zeros((1, hidden), jnp.float32),
            "w2": w_bf16(next(keys), (hidden, embed_dim), 0.02),
            "b2": jnp.zeros((1, embed_dim), jnp.float32),
        }
        params["blocks"].append(blk)
    return params


# ------------------------------------------------------------------ #
# ModelWithIntermediateLayers.forward equivalent                       #
# ------------------------------------------------------------------ #
def model_with_intermediate_layers_forward(
    images, params, *, patch_size, num_heads, n_last_blocks
):
    """images: NCHW float32. Returns tuple over the last n blocks of
    (patch_tokens [B, Np, D], class_token [B, D])."""
    B, C, H, W = images.shape
    P = patch_size
    Hp, Wp = H // P, W // P
    Np = Hp * Wp
    D = params["patch_w"].shape[1]
    assert D % num_heads == 0

    # ---- patch extraction (glue) + patch-embed matmul (Pallas, bf16 MXU) ----
    # equivalent to Conv2d(C, D, kernel=P, stride=P) on NCHW input
    patches = images.reshape(B, C, Hp, P, Wp, P)
    patches = jnp.transpose(patches, (0, 2, 4, 1, 3, 5))       # (B, Hp, Wp, C, P, P)
    patches_flat = patches.reshape(B * Np, C * P * P).astype(jnp.bfloat16)
    tok = patch_embed(patches_flat, params["patch_w"], params["patch_b"])
    tok = tok.reshape(B, Np, D)

    # ---- prepend cls token, add positional embedding (glue, f32) ----
    cls = jnp.broadcast_to(params["cls_token"], (B, 1, D))
    x = jnp.concatenate([cls, tok], axis=1) + params["pos_embed"]   # (B, Np+1, D)

    # ---- pad token count to a multiple of 8 (sublane alignment) ----
    n_valid = Np + 1
    n_pad = (-n_valid) % 8
    if n_pad:
        x = jnp.pad(x, ((0, 0), (0, n_pad), (0, 0)))
    # padded tokens are masked out of attention keys inside the block kernel

    # ---- transformer blocks (Pallas); final LN fused into collected blocks ----
    depth = len(params["blocks"])
    take_from = depth - n_last_blocks
    collected_norm = []
    for i, blk in enumerate(params["blocks"]):
        if i >= take_from:
            x, xn = run_vit_block(
                x, blk, num_heads, n_valid,
                final_norm=(params["final_g"], params["final_b"]))
            collected_norm.append(xn)
        else:
            x = run_vit_block(x, blk, num_heads, n_valid)

    # ---- strip padding, split cls / patch tokens ----
    features = []
    for hn in collected_norm:
        hn = hn[:, :n_valid, :]
        class_token = hn[:, 0, :]       # (B, D)
        patch_tokens = hn[:, 1:, :]     # (B, Np, D)
        features.append((patch_tokens, class_token))
    return tuple(features)


# ------------------------------------------------------------------ #
if __name__ == "__main__":
    # Small functional smoke-test config (D lane-aligned to 128; tokens padded to 8).
    B, C, H, W = 2, 3, 16, 16
    PATCH = 8
    EMBED = 128          # lane-aligned
    HEADS = 2            # head dim 64
    DEPTH = 3
    MLP_RATIO = 4
    N_LAST_BLOCKS = 2

    key = jax.random.PRNGKey(0)
    k_params, k_img = jax.random.split(key)
    params = make_params(
        k_params,
        img_size=H,
        patch_size=PATCH,
        in_chans=C,
        embed_dim=EMBED,
        depth=DEPTH,
        mlp_ratio=MLP_RATIO,
    )
    images = jax.random.normal(k_img, (B, C, H, W), dtype=jnp.float32)

    feats = model_with_intermediate_layers_forward(
        images, params, patch_size=PATCH, num_heads=HEADS, n_last_blocks=N_LAST_BLOCKS
    )
    jax.block_until_ready(feats)

    # sanity on structure: tuple of n_last_blocks (patch_tokens, class_token) pairs
    assert len(feats) == N_LAST_BLOCKS
    for patch_tokens, class_token in feats:
        assert patch_tokens.shape == (B, (H // PATCH) * (W // PATCH), EMBED)
        assert class_token.shape == (B, EMBED)
        assert bool(jnp.all(jnp.isfinite(patch_tokens)))
        assert bool(jnp.all(jnp.isfinite(class_token)))

    print("KERNEL_OK")
</pallas_src>

<mosaic_0001>
module attributes {stable_mosaic.version = 11 : i64} {
  func.func @_patch_embed_kernel(%arg0: i32, %arg1: memref<8x192xbf16, #tpu.memory_space<vmem>>, %arg2: memref<192x128xbf16, #tpu.memory_space<vmem>>, %arg3: memref<1x128xf32, #tpu.memory_space<vmem>>, %arg4: memref<8x128xf32, #tpu.memory_space<vmem>>) attributes {dimension_semantics = [#tpu.dimension_semantics<parallel>], iteration_bounds = array<i64: 1>, scalar_prefetch = 0 : i64, scratch_operands = 0 : i64, tpu.core_type = #tpu.core_type<tc>, window_params = [{transform_indices = @transform_0, window_bounds = array<i64: 8, 192>}, {pipeline_mode = #tpu.pipeline_mode<synchronous>, transform_indices = @transform_1, window_bounds = array<i64: 192, 128>}, {pipeline_mode = #tpu.pipeline_mode<synchronous>, transform_indices = @transform_2, window_bounds = array<i64: 1, 128>}, {transform_indices = @transform_3, window_bounds = array<i64: 8, 128>}]} {
    %c0 = arith.constant 0 : index
    %c0_0 = arith.constant 0 : index
    %0 = vector.load %arg1[%c0, %c0_0] : memref<8x192xbf16, #tpu.memory_space<vmem>>, vector<8x192xbf16>
    %c0_1 = arith.constant 0 : index
    %c0_2 = arith.constant 0 : index
    %1 = vector.load %arg2[%c0_1, %c0_2] : memref<192x128xbf16, #tpu.memory_space<vmem>>, vector<192x128xbf16>
    %cst = arith.constant dense<0.000000e+00> : vector<8x128xf32>
    %2 = tpu.matmul %0, %1, %cst {dimension_numbers = #tpu.dot_dimension_numbers<[1], [0], [0], [1], [0, 0, 1, 1], [], []>} : vector<8x192xbf16>, vector<192x128xbf16>, vector<8x128xf32> -> vector<8x128xf32>
    %c0_3 = arith.constant 0 : index
    %c0_4 = arith.constant 0 : index
    %3 = vector.load %arg3[%c0_3, %c0_4] : memref<1x128xf32, #tpu.memory_space<vmem>>, vector<1x128xf32>
    %4 = vector.broadcast %3 : vector<1x128xf32> to vector<8x128xf32>
    %5 = arith.addf %2, %4 : vector<8x128xf32>
    %c0_5 = arith.constant 0 : index
    %c0_6 = arith.constant 0 : index
    %6 = vector.load %arg4[%c0_5, %c0_6] : memref<8x128xf32, #tpu.memory_space<vmem>>, vector<8x128xf32>
    tpu.vector_store %arg4[%c0_5, %c0_6], %5 {strides = array<i32>} : memref<8x128xf32, #tpu.memory_space<vmem>>, vector<8x128xf32>,
    return
  }
  func.func @transform_0(%arg0: i32) -> (i32, i32) {
    %c0_i32 = arith.constant 0 : i32
    %c0_i32_0 = arith.constant 0 : i32
    return %arg0, %c0_i32 : i32, i32
  }
  func.func @transform_1(%arg0: i32) -> (i32, i32) {
    %c0_i32 = arith.constant 0 : i32
    %c0_i32_0 = arith.constant 0 : i32
    %c0_i32_1 = arith.constant 0 : i32
    return %c0_i32, %c0_i32_0 : i32, i32
  }
  func.func @transform_2(%arg0: i32) -> (i32, i32) {
    %c0_i32 = arith.constant 0 : i32
    %c0_i32_0 = arith.constant 0 : i32
    %c0_i32_1 = arith.constant 0 : i32
    return %c0_i32, %c0_i32_0 : i32, i32
  }
  func.func @transform_3(%arg0: i32) -> (i32, i32) {
    %c0_i32 = arith.constant 0 : i32
    %c0_i32_0 = arith.constant 0 : i32
    return %arg0, %c0_i32 : i32, i32
  }
}

</mosaic_0001>

<llo_original>
// kernel: tpu_custom_call.1
$region0: #{tpu_custom_call.1}
  #allocation0 [shape = 'u32[]', space=smem, size = 0x4, offset = 0x4, fixed_abs, tag = 'smem constant byte address 0x4 - core index']
  #allocation1 [shape = 'u32[144,128]{1,0:T(1,128)}', space=vmem, size = 0x12000, scoped, tag = 'internal scratch']
  %s0 = inlined_call_operand.hbm [shape: bf16[8,192], index: 0, kind: input, shape index: {}]
  %s1 = inlined_call_operand.hbm [shape: bf16[192,128], index: 1, kind: input, shape index: {}]
  %s2 = inlined_call_operand.vmem [shape: f32[1,128], index: 2, kind: input, shape index: {}]
  %s3 = inlined_call_operand.hbm [shape: f32[8,128], index: 3, kind: output, shape index: {}]
  %s4 = sld [smem:[#allocation0]]
  $region30: #{tpu_custom_call.1} parent=0
    _
  %s6 = ssub.s32 1, %s4
  %s7 = scalar_select 0, %s6, %s4
  $region1: #{tpu_custom_call.1} parent=0
    #allocation2 [shape = 'u8[4096]{0}', space=vmem, size = 0x1000, scoped, tag = 'input window, operand 0, single buffered']
    #allocation3 [shape = 's32[1]{0}', space=sflag, size = 0x4, scoped, tag = 'scoped memory for tpu_custom_call.1']
    #allocation4 [shape = 's32[1]{0}', space=sflag, size = 0x4, scoped, tag = 'scoped memory for tpu_custom_call.1']
    #allocation5 [shape = 'u8[49152]{0}', space=vmem, size = 0xc000, scoped, tag = 'input window, operand 1, single buffered']
    #allocation6 [shape = 's32[1]{0}', space=sflag, size = 0x4, scoped, tag = 'scoped memory for tpu_custom_call.1']
    #allocation7 [shape = 'u8[4096]{0}', space=vmem, size = 0x1000, scoped, tag = 'output window, operand 0, single buffered']
    %8 = vsyncpa [#allocation3], 0
    %9 = vsyncpa [#allocation6], 0
    %10 = vsyncpa [#allocation4], 0
    // Predicated region
    $region2: #{tpu_custom_call.1} parent=1 // pred_check
      _
    $region3: #{tpu_custom_call.1} parent=1 // pred_check_branch
      %12 = sbr.rel (0) target = $region5
    $region4: #{tpu_custom_call.1} parent=1 // pred_region
      %s14 = ssub.s32 128, 128
      %15 = vsyncadd [#allocation3], %s14
      %s17 = sshll.u32 [#allocation2], 4
      %s18 = int_to_ptr.vmem [resolvable:$true] %s17
      %20 = dma.hbm_to_vmem [thread:$0]  %s0, 128, %s18, [#allocation3]
    $region5: #{tpu_custom_call.1} parent=1 // pred_fallthru
      _
    // Predicated region
    $region6: #{tpu_custom_call.1} parent=1 // pred_check
      _
    $region7: #{tpu_custom_call.1} parent=1 // pred_check_branch
      %22 = sbr.rel (0) target = $region9
    $region8: #{tpu_custom_call.1} parent=1 // pred_region
      %s24 = ssub.s32 1536, 1536
      %25 = vsyncadd [#allocation6], %s24
      %s26 = sshll.u32 [#allocation5], 4
      %s27 = int_to_ptr.vmem [resolvable:$true] %s26
      %32 = dma.hbm_to_vmem [thread:$0]  %s1, 1536, %s27, [#allocation6], 64, 64, 4
    $region9: #{tpu_custom_call.1} parent=1 // pred_fallthru
      _
    // Predicated region
    $region10: #{tpu_custom_call.1} parent=1 // pred_check
      _
    $region11: #{tpu_custom_call.1} parent=1 // pred_check_branch
      %34 = sbr.rel (0) target = $region13
    $region12: #{tpu_custom_call.1} parent=1 // pred_region
      _
    $region13: #{tpu_custom_call.1} parent=1 // pred_fallthru
      _
    // Predicated region
    $region14: #{tpu_custom_call.1} parent=1 // pred_check
      _
    $region15: #{tpu_custom_call.1} parent=1 // pred_check_branch
      %36 = sbr.rel (0) target = $region17
    $region16: #{tpu_custom_call.1} parent=1 // pred_region
      %37 = dma.done [#allocation3], 128
    $region17: #{tpu_custom_call.1} parent=1 // pred_fallthru
      _
    // Predicated region
    $region18: #{tpu_custom_call.1} parent=1 // pred_check
      _
    $region19: #{tpu_custom_call.1} parent=1 // pred_check_branch
      %39 = sbr.rel (0) target = $region21
    $region20: #{tpu_custom_call.1} parent=1 // pred_region
      %40 = dma.done [#allocation6], 1536
    $region21: #{tpu_custom_call.1} parent=1 // pred_fallthru
      _
    %v42 = vld [vmem:[#allocation2] sm:$0xff]
    %v43 = vld [vmem:[#allocation5] sm:$0xf]
    %v44 = vld [vmem:[#allocation5 + $0x4] sm:$0xf]
    %v45 = vld [vmem:[#allocation5 + $0x8] sm:$0xf]
    %v46 = vld [vmem:[#allocation5 + $0xc] sm:$0xf]
    %v47 = vld [vmem:[#allocation5 + $0x10] sm:$0xf]
    %v48 = vld [vmem:[#allocation5 + $0x14] sm:$0xf]
    %v49 = vld [vmem:[#allocation5 + $0x18] sm:$0xf]
    %v50 = vld [vmem:[#allocation5 + $0x1c] sm:$0xf]
    %v51 = vld [vmem:[#allocation5 + $0x20] sm:$0xf]
    %v52 = vld [vmem:[#allocation5 + $0x24] sm:$0xf]
    %v53 = vld [vmem:[#allocation5 + $0x28] sm:$0xf]
    %v54 = vld [vmem:[#allocation5 + $0x2c] sm:$0xf]
    %v55 = vld [vmem:[#allocation5 + $0x30] sm:$0xf]
    %v56 = vld [vmem:[#allocation5 + $0x34] sm:$0xf]
    %v57 = vld [vmem:[#allocation5 + $0x38] sm:$0xf]
    %v58 = vld [vmem:[#allocation5 + $0x3c] sm:$0xf]
    %v59 = vld [vmem:[#allocation5 + $0x40] sm:$0xf]
    %v60 = vld [vmem:[#allocation5 + $0x44] sm:$0xf]
    %v61 = vld [vmem:[#allocation5 + $0x48] sm:$0xf]
    %v62 = vld [vmem:[#allocation5 + $0x4c] sm:$0xf]
    %v63 = vld [vmem:[#allocation5 + $0x50] sm:$0xf]
    %v64 = vld [vmem:[#allocation5 + $0x54] sm:$0xf]
    %v65 = vld [vmem:[#allocation5 + $0x58] sm:$0xf]
    %v66 = vld [vmem:[#allocation5 + $0x5c] sm:$0xf]
    %v67 = vld [vmem:[%s2] sm:$0x1]
    %v69 = vlaneseq
    %v70 = vshrl.u32 %v69, 7
    %v71 = vsub.s32 0, %v70
    %v72 = vrot.slane %v67, %v71
    %v75 = vunpack.c.l.b16 %v42
    %v76 = vunpack.c.h.b16 %v42
    %v77 = vpack.c.b16 %v75, %v75
    %v78 = vpack.c.b16 %v76, %v76
    %v104 = vunpack.c.l.b16 %v43
    %v105 = vunpack.c.l.b16 %v44
    %v106 = vunpack.c.l.b16 %v45
    %v107 = vunpack.c.l.b16 %v46
    %v108 = vunpack.c.l.b16 %v47
    %v109 = vunpack.c.l.b16 %v48
    %v110 = vunpack.c.l.b16 %v49
    %v111 = vunpack.c.l.b16 %v50
    %v112 = vunpack.c.l.b16 %v51
    %v113 = vunpack.c.l.b16 %v52
    %v114 = vunpack.c.l.b16 %v53
    %v115 = vunpack.c.l.b16 %v54
    %v116 = vunpack.c.l.b16 %v55
    %v117 = vunpack.c.l.b16 %v56
    %v118 = vunpack.c.l.b16 %v57
    %v119 = vunpack.c.l.b16 %v58
    %v120 = vunpack.c.l.b16 %v59
    %v121 = vunpack.c.l.b16 %v60
    %v122 = vunpack.c.l.b16 %v61
    %v123 = vunpack.c.l.b16 %v62
    %v124 = vunpack.c.l.b16 %v63
    %v125 = vunpack.c.l.b16 %v64
    %v126 = vunpack.c.l.b16 %v65
    %v127 = vunpack.c.l.b16 %v66
    %v128 = vpack.c.b16 %v105, %v104
    %v129 = vpack.c.b16 %v107, %v106
    %v130 = vpack.c.b16 %v109, %v108
    %v131 = vpack.c.b16 %v111, %v110
    %v132 = vpack.c.b16 %v113, %v112
    %v133 = vpack.c.b16 %v115, %v114
    %v134 = vpack.c.b16 %v117, %v116
    %v135 = vpack.c.b16 %v119, %v118
    %v136 = vpack.c.b16 %v121, %v120
    %v137 = vpack.c.b16 %v123, %v122
    %v138 = vpack.c.b16 %v125, %v124
    %v139 = vpack.c.b16 %v127, %v126
    %vm152 = vcmask 523264
    %v154 = vsel %vm152, %v78, 0
    %156 = vmatprep.subr.bf16.mxu0 0
    %157 = vmatpush1.bf16.msra.mxu0 %v135
    %158 = vmatprep.subr.bf16.mxu0 0
    %159 = vmatpush1.bf16.msra.mxu0 %v134
    %160 = vmatprep.subr.bf16.mxu0 0
    %161 = vmatpush1.bf16.msra.mxu0 %v133
    %162 = vmatprep.subr.bf16.mxu0 0
    %163 = vmatpush1.bf16.msra.mxu0 %v132
    %164 = vmatprep.subr.bf16.mxu0 0
    %165 = vmatpush1.bf16.msra.mxu0 %v131
    %166 = vmatprep.subr.bf16.mxu0 0
    %167 = vmatpush1.bf16.msra.mxu0 %v130
    %168 = vmatprep.subr.bf16.mxu0 0
    %169 = vmatpush1.bf16.msra.mxu0 %v129
    %170 = vmatprep.subr.bf16.mxu0 0
    %171 = vmatpush1.bf16.msra.mxu0 %v128
    %172 = vmatprep.subr.bf16.mxu0 0
    %173 = vmatpush2.bf16.msra.mxu0 0
    %174 = vmatprep.subr.bf16.mxu0 0
    %175 = vmatpush2.bf16.msra.mxu0 0
    %176 = vmatprep.subr.bf16.mxu0 0
    %177 = vmatpush2.bf16.msra.mxu0 0
    %178 = vmatprep.subr.bf16.mxu0 0
    %179 = vmatpush2.bf16.msra.mxu0 0
    %180 = vmatprep.subr.bf16.mxu0 0
    %181 = vmatpush2.bf16.msra.mxu0 %v139
    %182 = vmatprep.subr.bf16.mxu0 0
    %183 = vmatpush2.bf16.msra.mxu0 %v138
    %184 = vmatprep.subr.bf16.mxu0 0
    %185 = vmatpush2.bf16.msra.mxu0 %v137
    %186 = vmatprep.subr.bf16.mxu0 0
    %187 = vmatpush2.bf16.msra.mxu0 %v136
    %188 = vmatprep.mubr.bf16.mxu0 %v154
    %189 = vmatmul.mubr.bf16.gmra.mxu0 %v77
    %v190 = vpop.f32.mrf.mxu0
    %v191 = vadd.f32 %v72, %v190
    %v192 = vpop.f32.mrf.mxu0
    %v193 = vpop.f32.mrf.mxu0
    %v194 = vpop.f32.mrf.mxu0
    %195 = vdwg.mxu0
    %196 = vst [vmem:[#allocation7] sm:$0xff] %v191
    // Predicated region
    $region22: #{tpu_custom_call.1} parent=1 // pred_check
      _
    $region23: #{tpu_custom_call.1} parent=1 // pred_check_branch
      %198 = sbr.rel (0) target = $region25
    $region24: #{tpu_custom_call.1} parent=1 // pred_region
      %s200 = ssub.s32 128, 128
      %201 = vsyncadd [#allocation4], %s200
      %s203 = sshll.u32 [#allocation7], 4
      %s204 = int_to_ptr.vmem [resolvable:$true] %s203
      %206 = dma.vmem_to_hbm [thread:$0]  %s204, 128, %s3, [#allocation4]
    $region25: #{tpu_custom_call.1} parent=1 // pred_fallthru
      _
    // Predicated region
    $region26: #{tpu_custom_call.1} parent=1 // pred_check
      _
    $region27: #{tpu_custom_call.1} parent=1 // pred_check_branch
      %208 = sbr.rel (0) target = $region29
    $region28: #{tpu_custom_call.1} parent=1 // pred_region
      %209 = dma.done [#allocation4], 128
    $region29: #{tpu_custom_call.1} parent=1 // pred_fallthru
      _
    %210 = vsyncpa [#allocation3], 1
    %211 = vsyncpa [#allocation6], 1
    %212 = vsyncpa [#allocation4], 1

</llo_original>
